<compile_context>
chip_gen: v7x
topology: tpu7x:2x2x1
jax: 0.10.0
libtpu: 0.0.40
codegen_flags: <defaults>
</compile_context>

<pallas_src>
import jax
import jax.numpy as jnp
from jax.experimental import pallas as pl
from jax.experimental.pallas import tpu as pltpu

SUBLANE = 8  # f32 sublane packing unit (second-to-last block dim granularity)


def _round_up(n, m):
    return ((n + m - 1) // m) * m


def _cdiv(a, b):
    return (a + b - 1) // b


def _mlp_kernel(x_ref, w1_ref, b1_ref, w2_ref, b2_ref, o_ref):
    # x tile: (tile_b, in_size) f32 -> bf16 in-register (VPU cast, free).
    x = x_ref[...].astype(w1_ref.dtype)
    # hidden = relu(x @ W1 + b1), f32 accumulation on the MXU.
    h = jnp.dot(x, w1_ref[...], preferred_element_type=jnp.float32)
    h = jnp.maximum(h + b1_ref[...].astype(jnp.float32), 0.0)
    # out = hidden @ W2 + b2
    y = jnp.dot(h.astype(w2_ref.dtype), w2_ref[...],
                preferred_element_type=jnp.float32)
    y = y + b2_ref[...].astype(jnp.float32)
    o_ref[...] = y.astype(o_ref.dtype)


def pack_params(w1, b1, w2, b2, dtype=jnp.bfloat16):
    """Cast params to the compute dtype and shape biases as (1, n).

    Call ONCE per parameter update (hoisted out of the per-step forward).
    """
    return (w1.astype(dtype),
            jnp.reshape(b1, (1, -1)).astype(dtype),
            w2.astype(dtype),
            jnp.reshape(b2, (1, -1)).astype(dtype))


def linar_qnet_forward(x, params, *, max_tile_b=1024):
    """Forward pass of Linar_QNet as a batch-tiled Pallas kernel.

    x      : (B, input_size) float32
    params : (w1, b1, w2, b2) as returned by pack_params()
    returns (B, output_size) float32
    """
    w1, b1, w2, b2 = params
    B, in_size = x.shape
    hid = w1.shape[1]
    out = w2.shape[1]

    # Adaptive batch tiling: bound the tile at max_tile_b, keep it a multiple
    # of the sublane count, and keep batch-padding waste < SUBLANE rows/tile.
    n_tiles = max(1, _cdiv(B, max_tile_b))
    tile_b = _round_up(_cdiv(B, n_tiles), SUBLANE)
    b_pad = n_tiles * tile_b

    if b_pad != B:
        x = jnp.pad(x, ((0, b_pad - B), (0, 0)))

    x_isz = jnp.dtype(x.dtype).itemsize
    w_isz = jnp.dtype(w1.dtype).itemsize
    cost = pl.CostEstimate(
        flops=2 * b_pad * (in_size * hid + hid * out),
        transcendentals=0,
        bytes_accessed=(x_isz * (b_pad * in_size + b_pad * out)
                        + w_isz * (w1.size + b1.size + w2.size + b2.size)),
    )

    y = pl.pallas_call(
        _mlp_kernel,
        out_shape=jax.ShapeDtypeStruct((b_pad, out), x.dtype),
        grid_spec=pltpu.PrefetchScalarGridSpec(
            num_scalar_prefetch=0,
            grid=(n_tiles,),
            in_specs=[
                # Activations: tiled along batch; last dim == full array dim.
                pl.BlockSpec((tile_b, in_size), lambda i: (i, 0)),
                # Weights / biases: full-array blocks, resident across tiles.
                pl.BlockSpec((in_size, hid), lambda i: (0, 0)),
                pl.BlockSpec((1, hid), lambda i: (0, 0)),
                pl.BlockSpec((hid, out), lambda i: (0, 0)),
                pl.BlockSpec((1, out), lambda i: (0, 0)),
            ],
            out_specs=pl.BlockSpec((tile_b, out), lambda i: (i, 0)),
        ),
        compiler_params=pltpu.CompilerParams(
            dimension_semantics=("parallel",),
        ),
        cost_estimate=cost,
    )(x, w1, b1, w2, b2)

    return y[:B] if b_pad != B else y


def init_params(key, input_size, hidden_size, output_size, dtype=jnp.float32):
    """Deterministic init mimicking nn.Linear (uniform +-1/sqrt(fan_in))."""
    k1, k2, k3, k4 = jax.random.split(key, 4)
    lim1 = 1.0 / (input_size ** 0.5)
    lim2 = 1.0 / (hidden_size ** 0.5)
    w1 = jax.random.uniform(k1, (input_size, hidden_size), dtype, -lim1, lim1)
    b1 = jax.random.uniform(k2, (hidden_size,), dtype, -lim1, lim1)
    w2 = jax.random.uniform(k3, (hidden_size, output_size), dtype, -lim2, lim2)
    b2 = jax.random.uniform(k4, (output_size,), dtype, -lim2, lim2)
    return w1, b1, w2, b2


def reference_forward(x, w1, b1, w2, b2):
    """Plain-JAX reference; mirrors the kernel when given bf16 params."""
    h = jnp.dot(x.astype(w1.dtype), w1, preferred_element_type=jnp.float32)
    h = jnp.maximum(h + jnp.reshape(b1, (1, -1)).astype(jnp.float32), 0.0)
    y = jnp.dot(h.astype(w2.dtype), w2, preferred_element_type=jnp.float32)
    return y + jnp.reshape(b2, (1, -1)).astype(jnp.float32)


if __name__ == "__main__":
    # Snake DQN shapes: 11 state features -> 32 hidden -> 3 actions; batch=8.
    batch, input_size, hidden_size, output_size = 8, 11, 32, 3

    key = jax.random.PRNGKey(0)
    kx, kp, kx2 = jax.random.split(key, 3)
    x = jax.random.normal(kx, (batch, input_size), jnp.float32)
    w1, b1, w2, b2 = init_params(kp, input_size, hidden_size, output_size)

    # Pack once (hoisted out of the hot path), then run the kernel.
    params = pack_params(w1, b1, w2, b2)
    out = jax.block_until_ready(linar_qnet_forward(x, params))
    assert out.shape == (batch, output_size)

    # Tight check against a reference that uses the identical bf16/f32-acc math.
    ref_matched = reference_forward(x, *params)
    assert jnp.allclose(out, ref_matched, atol=5e-3, rtol=5e-3)
    # Loose check against the full-f32 reference (bf16 rounding tolerance).
    ref_f32 = reference_forward(x, w1, b1, w2, b2)
    assert jnp.allclose(out, ref_f32, atol=3e-2, rtol=3e-2)

    # Exercise the multi-tile / batch-padded path (grid > 1, b_pad > B).
    big_b = 1030
    x_big = jax.random.normal(kx2, (big_b, input_size), jnp.float32)
    out_big = jax.block_until_ready(
        linar_qnet_forward(x_big, params, max_tile_b=512))
    assert out_big.shape == (big_b, output_size)
    assert jnp.allclose(out_big, reference_forward(x_big, *params),
                        atol=5e-3, rtol=5e-3)

    print("KERNEL_OK")
</pallas_src>

<mosaic_0001>
module attributes {stable_mosaic.version = 11 : i64} {
  func.func @_mlp_kernel(%arg0: i32, %arg1: memref<8x11xf32, #tpu.memory_space<vmem>>, %arg2: memref<11x32xbf16, #tpu.memory_space<vmem>>, %arg3: memref<1x32xbf16, #tpu.memory_space<vmem>>, %arg4: memref<32x3xbf16, #tpu.memory_space<vmem>>, %arg5: memref<1x3xbf16, #tpu.memory_space<vmem>>, %arg6: memref<8x3xf32, #tpu.memory_space<vmem>>) attributes {dimension_semantics = [#tpu.dimension_semantics<parallel>], iteration_bounds = array<i64: 1>, scalar_prefetch = 0 : i64, scratch_operands = 0 : i64, tpu.core_type = #tpu.core_type<tc>, window_params = [{transform_indices = @transform_0, window_bounds = array<i64: 8, 11>}, {pipeline_mode = #tpu.pipeline_mode<synchronous>, transform_indices = @transform_1, window_bounds = array<i64: 11, 32>}, {pipeline_mode = #tpu.pipeline_mode<synchronous>, transform_indices = @transform_2, window_bounds = array<i64: 1, 32>}, {pipeline_mode = #tpu.pipeline_mode<synchronous>, transform_indices = @transform_3, window_bounds = array<i64: 32, 3>}, {pipeline_mode = #tpu.pipeline_mode<synchronous>, transform_indices = @transform_4, window_bounds = array<i64: 1, 3>}, {transform_indices = @transform_5, window_bounds = array<i64: 8, 3>}]} {
    %c0 = arith.constant 0 : index
    %c0_0 = arith.constant 0 : index
    %0 = vector.load %arg1[%c0, %c0_0] : memref<8x11xf32, #tpu.memory_space<vmem>>, vector<8x11xf32>
    %1 = arith.truncf %0 : vector<8x11xf32> to vector<8x11xbf16>
    %c0_1 = arith.constant 0 : index
    %c0_2 = arith.constant 0 : index
    %2 = vector.load %arg2[%c0_1, %c0_2] : memref<11x32xbf16, #tpu.memory_space<vmem>>, vector<11x32xbf16>
    %cst = arith.constant dense<0.000000e+00> : vector<8x32xf32>
    %3 = tpu.matmul %1, %2, %cst {dimension_numbers = #tpu.dot_dimension_numbers<[1], [0], [0], [1], [0, 0, 1, 1], [], []>} : vector<8x11xbf16>, vector<11x32xbf16>, vector<8x32xf32> -> vector<8x32xf32>
    %c0_3 = arith.constant 0 : index
    %c0_4 = arith.constant 0 : index
    %4 = vector.load %arg3[%c0_3, %c0_4] : memref<1x32xbf16, #tpu.memory_space<vmem>>, vector<1x32xbf16>
    %5 = arith.extf %4 : vector<1x32xbf16> to vector<1x32xf32>
    %6 = vector.broadcast %5 : vector<1x32xf32> to vector<8x32xf32>
    %7 = arith.addf %3, %6 : vector<8x32xf32>
    %cst_5 = arith.constant 0.000000e+00 : f32
    %8 = vector.broadcast %cst_5 : f32 to vector<8x32xf32>
    %9 = arith.maximumf %7, %8 : vector<8x32xf32>
    %10 = arith.truncf %9 : vector<8x32xf32> to vector<8x32xbf16>
    %c0_6 = arith.constant 0 : index
    %c0_7 = arith.constant 0 : index
    %11 = vector.load %arg4[%c0_6, %c0_7] : memref<32x3xbf16, #tpu.memory_space<vmem>>, vector<32x3xbf16>
    %cst_8 = arith.constant dense<0.000000e+00> : vector<8x3xf32>
    %12 = tpu.matmul %10, %11, %cst_8 {dimension_numbers = #tpu.dot_dimension_numbers<[1], [0], [0], [1], [0, 0, 1, 1], [], []>} : vector<8x32xbf16>, vector<32x3xbf16>, vector<8x3xf32> -> vector<8x3xf32>
    %c0_9 = arith.constant 0 : index
    %c0_10 = arith.constant 0 : index
    %13 = vector.load %arg5[%c0_9, %c0_10] : memref<1x3xbf16, #tpu.memory_space<vmem>>, vector<1x3xbf16>
    %14 = arith.extf %13 : vector<1x3xbf16> to vector<1x3xf32>
    %15 = vector.broadcast %14 : vector<1x3xf32> to vector<8x3xf32>
    %16 = arith.addf %12, %15 : vector<8x3xf32>
    %c0_11 = arith.constant 0 : index
    %c0_12 = arith.constant 0 : index
    %17 = vector.load %arg6[%c0_11, %c0_12] : memref<8x3xf32, #tpu.memory_space<vmem>>, vector<8x3xf32>
    tpu.vector_store %arg6[%c0_11, %c0_12], %16 {strides = array<i32>} : memref<8x3xf32, #tpu.memory_space<vmem>>, vector<8x3xf32>,
    return
  }
  func.func @transform_0(%arg0: i32) -> (i32, i32) {
    %c0_i32 = arith.constant 0 : i32
    %c0_i32_0 = arith.constant 0 : i32
    return %arg0, %c0_i32 : i32, i32
  }
  func.func @transform_1(%arg0: i32) -> (i32, i32) {
    %c0_i32 = arith.constant 0 : i32
    %c0_i32_0 = arith.constant 0 : i32
    %c0_i32_1 = arith.constant 0 : i32
    return %c0_i32, %c0_i32_0 : i32, i32
  }
  func.func @transform_2(%arg0: i32) -> (i32, i32) {
    %c0_i32 = arith.constant 0 : i32
    %c0_i32_0 = arith.constant 0 : i32
    %c0_i32_1 = arith.constant 0 : i32
    return %c0_i32, %c0_i32_0 : i32, i32
  }
  func.func @transform_3(%arg0: i32) -> (i32, i32) {
    %c0_i32 = arith.constant 0 : i32
    %c0_i32_0 = arith.constant 0 : i32
    %c0_i32_1 = arith.constant 0 : i32
    return %c0_i32, %c0_i32_0 : i32, i32
  }
  func.func @transform_4(%arg0: i32) -> (i32, i32) {
    %c0_i32 = arith.constant 0 : i32
    %c0_i32_0 = arith.constant 0 : i32
    %c0_i32_1 = arith.constant 0 : i32
    return %c0_i32, %c0_i32_0 : i32, i32
  }
  func.func @transform_5(%arg0: i32) -> (i32, i32) {
    %c0_i32 = arith.constant 0 : i32
    %c0_i32_0 = arith.constant 0 : i32
    return %arg0, %c0_i32 : i32, i32
  }
}

</mosaic_0001>

<llo_original>
// kernel: tpu_custom_call.1
$region0: #{tpu_custom_call.1}
  #allocation0 [shape = 'u32[]', space=smem, size = 0x4, offset = 0x4, fixed_abs, tag = 'smem constant byte address 0x4 - core index']
  #allocation1 [shape = 'u32[144,128]{1,0:T(1,128)}', space=vmem, size = 0x12000, scoped, tag = 'internal scratch']
  %s0 = inlined_call_operand.vmem [shape: f32[8,11], index: 0, kind: input, shape index: {}]
  %s1 = inlined_call_operand.vmem [shape: bf16[11,32], index: 1, kind: input, shape index: {}]
  %s2 = inlined_call_operand.vmem [shape: bf16[1,32], index: 2, kind: input, shape index: {}]
  %s3 = inlined_call_operand.vmem [shape: bf16[32,3], index: 3, kind: input, shape index: {}]
  %s4 = inlined_call_operand.vmem [shape: bf16[1,3], index: 4, kind: input, shape index: {}]
  %s5 = inlined_call_operand.vmem [shape: f32[8,3], index: 5, kind: output, shape index: {}]
  %s6 = sld [smem:[#allocation0]]
  $region30: #{tpu_custom_call.1} parent=0
    _
  %s8 = ssub.s32 1, %s6
  %s9 = scalar_select 0, %s8, %s6
  // Predicated region
  $region2: #{tpu_custom_call.1} parent=0 // pred_check
    _
  $region3: #{tpu_custom_call.1} parent=0 // pred_check_branch
    %11 = sbr.rel (0) target = $region5
  $region4: #{tpu_custom_call.1} parent=0 // pred_region
    _
  $region5: #{tpu_custom_call.1} parent=0 // pred_fallthru
    _
  // Predicated region
  $region6: #{tpu_custom_call.1} parent=0 // pred_check
    _
  $region7: #{tpu_custom_call.1} parent=0 // pred_check_branch
    %13 = sbr.rel (0) target = $region9
  $region8: #{tpu_custom_call.1} parent=0 // pred_region
    _
  $region9: #{tpu_custom_call.1} parent=0 // pred_fallthru
    _
  // Predicated region
  $region10: #{tpu_custom_call.1} parent=0 // pred_check
    _
  $region11: #{tpu_custom_call.1} parent=0 // pred_check_branch
    %15 = sbr.rel (0) target = $region13
  $region12: #{tpu_custom_call.1} parent=0 // pred_region
    _
  $region13: #{tpu_custom_call.1} parent=0 // pred_fallthru
    _
  // Predicated region
  $region14: #{tpu_custom_call.1} parent=0 // pred_check
    _
  $region15: #{tpu_custom_call.1} parent=0 // pred_check_branch
    %17 = sbr.rel (0) target = $region17
  $region16: #{tpu_custom_call.1} parent=0 // pred_region
    _
  $region17: #{tpu_custom_call.1} parent=0 // pred_fallthru
    _
  // Predicated region
  $region18: #{tpu_custom_call.1} parent=0 // pred_check
    _
  $region19: #{tpu_custom_call.1} parent=0 // pred_check_branch
    %19 = sbr.rel (0) target = $region21
  $region20: #{tpu_custom_call.1} parent=0 // pred_region
    _
  $region21: #{tpu_custom_call.1} parent=0 // pred_fallthru
    _
  %v21 = vld [vmem:[%s0] sm:$0xff]
  %v22 = vpack.c.bf16 %v21, %v21
  %v23 = vld [vmem:[%s1] sm:$0xf]
  %v24 = vld [vmem:[%s1 + $0x4] sm:$0x3]
  %v25 = vld [vmem:[%s2] sm:$0x1]
  %v26 = vunpack.c.l.bf16 %v25
  %v27 = vlaneseq
  %v28 = vshrl.u32 %v27, 7
  %v29 = vsub.s32 0, %v28
  %v30 = vrot.slane %v26, %v29
  %v33 = vunpack.c.l.b16 %v23
  %v34 = vunpack.c.l.b16 %v24
  %v35 = vpack.c.b16 %v34, %v33
  %vm36 = vcmask 89088
  %v38 = vsel %vm36, %v22, 0
  %vm40 = vcmask 1044480
  %vm41 = vcmask 1045504
  %v42 = vsel %vm40, 4294967295, 65535
  %v43 = vsel %vm41, %v42, 0
  %v45 = vand.u32 %v35, %v43
  %47 = vmatprep.subr.bf16.mxu0 0
  %48 = vmatpush1.bf16.msra.mxu0 %v45
  %49 = vmatprep.subr.bf16.mxu0 0
  %50 = vmatpush1.bf16.msra.mxu0 0
  %51 = vmatprep.subr.bf16.mxu0 0
  %52 = vmatpush1.bf16.msra.mxu0 0
  %53 = vmatprep.subr.bf16.mxu0 0
  %54 = vmatpush1.bf16.msra.mxu0 0
  %55 = vmatprep.subr.bf16.mxu0 0
  %56 = vmatpush1.bf16.msra.mxu0 0
  %57 = vmatprep.subr.bf16.mxu0 0
  %58 = vmatpush1.bf16.msra.mxu0 0
  %59 = vmatprep.subr.bf16.mxu0 0
  %60 = vmatpush1.bf16.msra.mxu0 0
  %61 = vmatprep.subr.bf16.mxu0 0
  %62 = vmatpush1.bf16.msra.mxu0 0
  %63 = vmatprep.subr.bf16.mxu0 0
  %64 = vmatpush1.bf16.msra.mxu0 0
  %65 = vmatprep.subr.bf16.mxu0 0
  %66 = vmatpush1.bf16.msra.mxu0 0
  %67 = vmatprep.subr.bf16.mxu0 0
  %68 = vmatpush1.bf16.msra.mxu0 0
  %69 = vmatprep.subr.bf16.mxu0 0
  %70 = vmatpush1.bf16.msra.mxu0 0
  %71 = vmatprep.subr.bf16.mxu0 0
  %72 = vmatpush1.bf16.msra.mxu0 0
  %73 = vmatprep.subr.bf16.mxu0 0
  %74 = vmatpush1.bf16.msra.mxu0 0
  %75 = vmatprep.subr.bf16.mxu0 0
  %76 = vmatpush1.bf16.msra.mxu0 0
  %77 = vmatprep.subr.bf16.mxu0 0
  %78 = vmatpush1.bf16.msra.mxu0 0
  %79 = vmatprep.mubr.bf16.mxu0 0
  %80 = vmatmul.mubr.bf16.gmra.mrb[0].mxu0 %v38
  %v81 = vpop.f32.mrb[0].mxu0
  %v82 = vadd.f32 %v30, %v81
  %v83 = vpop.f32.mrb[0].mxu0
  %v84 = vpop.f32.mrb[0].mxu0
  %v85 = vpop.f32.mrb[0].mxu0
  %86 = vdwg.mxu0
  %v87 = vmax.f32 %v82, 0.0
  %v88 = vpack.c.bf16 %v87, %v87
  %v89 = vld [vmem:[%s3] sm:$0xf]
  %v90 = vld [vmem:[%s3 + $0x4] sm:$0xf]
  %v91 = vld [vmem:[%s3 + $0x8] sm:$0xf]
  %v92 = vld [vmem:[%s3 + $0xc] sm:$0xf]
  %v93 = vld [vmem:[%s4] sm:$0x1]
  %v94 = vunpack.c.l.bf16 %v93
  %v95 = vlaneseq
  %v96 = vshrl.u32 %v95, 7
  %v97 = vsub.s32 0, %v96
  %v98 = vrot.slane %v94, %v97
  %v103 = vunpack.c.l.b16 %v89
  %v104 = vunpack.c.l.b16 %v90
  %v105 = vunpack.c.l.b16 %v91
  %v106 = vunpack.c.l.b16 %v92
  %v107 = vpack.c.b16 %v104, %v103
  %v108 = vpack.c.b16 %v106, %v105
  %vm111 = vcmask 261120
  %v113 = vsel %vm111, %v88, 0
  %115 = vmatprep.subr.bf16.mxu0 0
  %116 = vmatpush1.bf16.msra.mxu0 %v107
  %117 = vmatprep.subr.bf16.mxu0 0
  %118 = vmatpush1.bf16.msra.mxu0 %v108
  %119 = vmatprep.subr.bf16.mxu0 0
  %120 = vmatpush1.bf16.msra.mxu0 0
  %121 = vmatprep.subr.bf16.mxu0 0
  %122 = vmatpush1.bf16.msra.mxu0 0
  %123 = vmatprep.subr.bf16.mxu0 0
  %124 = vmatpush1.bf16.msra.mxu0 0
  %125 = vmatprep.subr.bf16.mxu0 0
  %126 = vmatpush1.bf16.msra.mxu0 0
  %127 = vmatprep.subr.bf16.mxu0 0
  %128 = vmatpush1.bf16.msra.mxu0 0
  %129 = vmatprep.subr.bf16.mxu0 0
  %130 = vmatpush1.bf16.msra.mxu0 0
  %131 = vmatprep.subr.bf16.mxu0 0
  %132 = vmatpush1.bf16.msra.mxu0 0
  %133 = vmatprep.subr.bf16.mxu0 0
  %134 = vmatpush1.bf16.msra.mxu0 0
  %135 = vmatprep.subr.bf16.mxu0 0
  %136 = vmatpush1.bf16.msra.mxu0 0
  %137 = vmatprep.subr.bf16.mxu0 0
  %138 = vmatpush1.bf16.msra.mxu0 0
  %139 = vmatprep.subr.bf16.mxu0 0
  %140 = vmatpush1.bf16.msra.mxu0 0
  %141 = vmatprep.subr.bf16.mxu0 0
  %142 = vmatpush1.bf16.msra.mxu0 0
  %143 = vmatprep.subr.bf16.mxu0 0
  %144 = vmatpush1.bf16.msra.mxu0 0
  %145 = vmatprep.subr.bf16.mxu0 0
  %146 = vmatpush1.bf16.msra.mxu0 0
  %147 = vmatprep.mubr.bf16.mxu0 0
  %148 = vmatmul.mubr.bf16.gmra.mrb[0].mxu0 %v113
  %v149 = vpop.f32.mrb[0].mxu0
  %v150 = vadd.f32 %v98, %v149
  %v151 = vpop.f32.mrb[0].mxu0
  %v152 = vpop.f32.mrb[0].mxu0
  %v153 = vpop.f32.mrb[0].mxu0
  %154 = vdwg.mxu0
  %vm155 = vcmask 23552
  %156 = vst.msk [vmem:[%s5] sm:$0xff] %vm155, %v150
  // Predicated region
  $region22: #{tpu_custom_call.1} parent=0 // pred_check
    _
  $region23: #{tpu_custom_call.1} parent=0 // pred_check_branch
    %158 = sbr.rel (0) target = $region25
  $region24: #{tpu_custom_call.1} parent=0 // pred_region
    _
  $region25: #{tpu_custom_call.1} parent=0 // pred_fallthru
    _
  // Predicated region
  $region26: #{tpu_custom_call.1} parent=0 // pred_check
    _
  $region27: #{tpu_custom_call.1} parent=0 // pred_check_branch
    %160 = sbr.rel (0) target = $region29
  $region28: #{tpu_custom_call.1} parent=0 // pred_region
    _
  $region29: #{tpu_custom_call.1} parent=0 // pred_fallthru
    _

</llo_original>
